<compile_context>
chip_gen: v6e
topology: v6e:2x2x1
jax: 0.10.0
libtpu: 0.0.40
codegen_flags: <defaults>
</compile_context>

<pallas_src>
import jax
import jax.numpy as jnp
from jax.experimental import pallas as pl
from jax.experimental.pallas import tpu as pltpu


# --------------------------- small helpers --------------------------------- #

def _round_up(x, m):
    return ((x + m - 1) // m) * m


def _pick_tile(dim, target, align):
    """Largest tile <= target that is a multiple of `align` and divides `dim`.
    Falls back to the full extent when `dim` is not `align`-aligned."""
    if dim % align != 0:
        return dim
    t = min(target, dim)
    t -= t % align
    while t >= align:
        if dim % t == 0:
            return t
        t -= align
    return dim


def _vmem_limit_bytes():
    """Generation-aware scoped-VMEM limit; conservative 64 MiB (v7x) fallback."""
    cap = 64 * 1024 * 1024
    try:
        cap = int(pltpu.get_tpu_info().vmem_capacity_bytes)
    except Exception:
        pass
    # Leave compiler headroom; never request more than ~100 MiB even on 128 MiB parts.
    return max(16 * 1024 * 1024, min(cap * 3 // 4, 100 * 1024 * 1024))


def _fit_tiles(n_pad, out_dim, usage_fn, budget, tm, tn):
    """Shrink (tm, tn) until the double-buffered working set fits `budget`."""
    while usage_fn(tm, tn) > budget:
        if tn > 128:
            new_tn = _pick_tile(out_dim, tn // 2, 128)
            if new_tn < tn:
                tn = new_tn
                continue
        if tm > 8:
            new_tm = _pick_tile(n_pad, tm // 2, 8)
            if new_tm < tm:
                tm = new_tm
                continue
        break
    return tm, tn


# ------------------------------ kernels ------------------------------------ #

def _onehot_gather(ids_block, table_f32):
    """rows = table[ids] via one-hot MXU matmuls -> single lane-dense value.

    The f32 table is split into a bf16-exact high part plus a small residual,
    so the gathered rows stay ~exact (rel err < 1e-5) regardless of the MXU's
    f32 handling, while both dots run at full bf16 MXU rate.
      ids_block: (tm, 1) int32 ; table_f32: (S, tn) f32 -> (tm, tn) f32
    """
    tm = ids_block.shape[0]
    S = table_f32.shape[0]
    sel = (jax.lax.broadcasted_iota(jnp.int32, (tm, S), 1) == ids_block
           ).astype(jnp.bfloat16)
    hi = table_f32.astype(jnp.bfloat16)
    lo = (table_f32 - hi.astype(jnp.float32)).astype(jnp.bfloat16)
    return (jnp.dot(sel, hi, preferred_element_type=jnp.float32)
            + jnp.dot(sel, lo, preferred_element_type=jnp.float32))


def _mlp_gather_kernel(ids_ref, emb_ref, w1_ref, b1_ref, w2_ref, b2_ref,
                       out_ref, tbl_ref):
    """Fused table projection + gather.

    grid = (out_dim // tn  [outer, parallel], n_pad // tm  [inner, arbitrary]).
    The projected table column tile (S, tn) is computed once per column
    (row step 0) into VMEM scratch; every row step gathers (tm, tn) rows from
    it and issues a single unmasked lane-dense store.  The tiny first GEMM is
    recomputed per column tile (keeps the column axis "parallel" for v7x
    megacore; the recompute hides under the W2 DMA stream).
    """
    @pl.when(pl.program_id(1) == 0)
    def _():
        h = jnp.dot(emb_ref[...], w1_ref[...],
                    preferred_element_type=jnp.float32) + b1_ref[...]
        h = jnp.tanh(h).astype(w2_ref.dtype)
        tbl_ref[...] = jnp.dot(h, w2_ref[...],
                               preferred_element_type=jnp.float32) + b2_ref[...]

    out_ref[...] = _onehot_gather(ids_ref[...], tbl_ref[...]).astype(out_ref.dtype)


def _gather_kernel(ids_ref, table_ref, out_ref):
    """Plain embedding lookup: out[i] = table[ids[i]] (one-hot MXU gather)."""
    out_ref[...] = _onehot_gather(ids_ref[...],
                                  table_ref[...].astype(jnp.float32)
                                  ).astype(out_ref.dtype)


# ------------------------------ wrappers ------------------------------------ #

def _prefix_mlp_gather(ids, emb, w1, b1, w2, b2, *, out_dtype=jnp.float32):
    """gather(tanh(emb @ W1 + b1) @ W2 + b2, ids) fused in one HBM pass."""
    N = ids.shape[0]
    S, H = emb.shape
    Ph = w1.shape[-1]
    out_dim = w2.shape[-1]
    wb = jnp.dtype(w2.dtype).itemsize
    ob = jnp.dtype(out_dtype).itemsize

    n_pad = _round_up(max(N, 1), 8)
    if n_pad != N:
        ids = jnp.concatenate([ids, jnp.zeros((n_pad - N,), jnp.int32)], axis=0)
    ids2 = ids.reshape(n_pad, 1)

    vmem = _vmem_limit_bytes()
    tn = _pick_tile(out_dim, 2048, 128)   # lane-dense output columns per step
    tm = _pick_tile(n_pad, 512, 8)        # output rows per step

    def usage(tm_, tn_):
        return (2 * Ph * tn_ * wb              # W2 tile (double-buffered)
                + 2 * tn_ * 4                  # b2 tile
                + S * tn_ * 4                  # table scratch (single)
                + 2 * tm_ * tn_ * ob           # output tile (double-buffered)
                + 2 * (S * H + H * Ph + Ph) * wb   # emb / W1 / b1 (resident)
                + 2 * tm_ * 4)                 # ids tile

    # TODO(synk): a huge non-128-aligned out_dim or a very large H*Ph (W1 must
    # stay resident) would need a K-split of the GEMMs; not handled here.
    tm, tn = _fit_tiles(n_pad, out_dim, usage, int(vmem * 0.6), tm, tn)

    n_col = out_dim // tn
    grid = (n_col, n_pad // tm)           # columns OUTER, output rows INNER

    cost = pl.CostEstimate(
        flops=(2 * S * H * Ph * n_col        # first GEMM (recomputed per column)
               + 2 * S * Ph * out_dim        # second GEMM (once)
               + 4 * n_pad * S * out_dim),   # hi/lo one-hot gather
        transcendentals=S * Ph * n_col,
        bytes_accessed=((S * H + H * Ph + Ph * out_dim) * wb
                        + (Ph + out_dim) * 4 + n_pad * 4
                        + n_pad * out_dim * ob),
    )

    out = pl.pallas_call(
        _mlp_gather_kernel,
        out_shape=jax.ShapeDtypeStruct((n_pad, out_dim), out_dtype),
        grid_spec=pltpu.PrefetchScalarGridSpec(
            num_scalar_prefetch=0,
            grid=grid,
            in_specs=[
                pl.BlockSpec((tm, 1), lambda j, i: (i, 0)),   # prefix ids row tile
                pl.BlockSpec((S, H), lambda j, i: (0, 0)),    # embedding table
                pl.BlockSpec((H, Ph), lambda j, i: (0, 0)),   # W1
                pl.BlockSpec((1, Ph), lambda j, i: (0, 0)),   # b1
                pl.BlockSpec((Ph, tn), lambda j, i: (0, j)),  # W2 column stream
                pl.BlockSpec((1, tn), lambda j, i: (0, j)),   # b2 column tile
            ],
            out_specs=pl.BlockSpec((tm, tn), lambda j, i: (i, j)),
            scratch_shapes=[pltpu.VMEM((S, tn), jnp.float32)],
        ),
        compiler_params=pltpu.CompilerParams(
            dimension_semantics=("parallel", "arbitrary"),
            vmem_limit_bytes=vmem),
        cost_estimate=cost,
    )(ids2, emb, w1, b1, w2, b2)
    return out[:N] if n_pad != N else out


def _gather_rows(ids, table, *, out_dtype=jnp.float32):
    """out[n] = table[ids[n]]; every table column tile is streamed exactly once."""
    N = ids.shape[0]
    S, D = table.shape
    tb = jnp.dtype(table.dtype).itemsize
    ob = jnp.dtype(out_dtype).itemsize

    n_pad = _round_up(max(N, 1), 8)
    if n_pad != N:
        ids = jnp.concatenate([ids, jnp.zeros((n_pad - N,), jnp.int32)], axis=0)
    ids2 = ids.reshape(n_pad, 1)

    vmem = _vmem_limit_bytes()
    tn = _pick_tile(D, 2048, 128)
    tm = _pick_tile(n_pad, 512, 8)

    def usage(tm_, tn_):
        return 2 * S * tn_ * tb + 2 * tm_ * tn_ * ob + 2 * tm_ * 4

    tm, tn = _fit_tiles(n_pad, D, usage, int(vmem * 0.6), tm, tn)
    grid = (D // tn, n_pad // tm)          # columns OUTER, output rows INNER

    cost = pl.CostEstimate(
        flops=4 * n_pad * S * D, transcendentals=0,
        bytes_accessed=S * D * tb + n_pad * 4 + n_pad * D * ob)

    out = pl.pallas_call(
        _gather_kernel,
        out_shape=jax.ShapeDtypeStruct((n_pad, D), out_dtype),
        grid_spec=pltpu.PrefetchScalarGridSpec(
            num_scalar_prefetch=0,
            grid=grid,
            in_specs=[
                pl.BlockSpec((tm, 1), lambda j, i: (i, 0)),   # prefix ids row tile
                pl.BlockSpec((S, tn), lambda j, i: (0, j)),   # table column tile
            ],
            out_specs=pl.BlockSpec((tm, tn), lambda j, i: (i, j)),
        ),
        compiler_params=pltpu.CompilerParams(
            dimension_semantics=("parallel", "parallel"),
            vmem_limit_bytes=vmem),
        cost_estimate=cost,
    )(ids2, table)
    return out[:N] if n_pad != N else out


def prepare_params(params, prefix_projection, weights_dtype=jnp.bfloat16):
    """One-time weight casting, hoisted out of the per-forward path (so the
    bf16 cast of W2 is not an extra HBM pass on every call)."""
    if not prefix_projection:
        return {"embedding": jnp.asarray(params["embedding"], jnp.float32)}
    Ph = params["w1"].shape[-1]
    out_dim = params["w2"].shape[-1]
    return {
        "embedding": jnp.asarray(params["embedding"], weights_dtype),
        "w1": jnp.asarray(params["w1"], weights_dtype),
        "b1": jnp.asarray(params["b1"], jnp.float32).reshape(1, Ph),
        "w2": jnp.asarray(params["w2"], weights_dtype),
        "b2": jnp.asarray(params["b2"], jnp.float32).reshape(1, out_dim),
    }


def prefix_encoder_forward(prefix, params, prefix_projection,
                           out_dtype=jnp.float32):
    """prefix: (B, P) int32 ids in [0, pre_seq_len). Returns (B, P, 2*L*H).

    `params` should come from prepare_params.  Set out_dtype=jnp.bfloat16 to
    halve the (dominant) output HBM stream — opt-in, changes numerics.
    """
    B, P = prefix.shape
    ids = prefix.reshape(-1).astype(jnp.int32)
    # TODO(synk): out-of-range ids are not validated (torch.nn.Embedding raises).
    if prefix_projection:
        flat = _prefix_mlp_gather(ids, params["embedding"], params["w1"],
                                  params["b1"], params["w2"], params["b2"],
                                  out_dtype=out_dtype)
    else:
        flat = _gather_rows(ids, params["embedding"], out_dtype=out_dtype)
    return flat.reshape(B, P, flat.shape[-1])


# ------------------------- parameter construction -------------------------- #

def init_params(key, *, pre_seq_len, hidden_size, prefix_hidden_size,
                num_hidden_layers, prefix_projection):
    out_dim = num_hidden_layers * 2 * hidden_size
    k = jax.random.split(key, 5)
    if prefix_projection:
        return {
            "embedding": jax.random.normal(k[0], (pre_seq_len, hidden_size),
                                           jnp.float32),
            "w1": 0.05 * jax.random.normal(k[1], (hidden_size,
                                                  prefix_hidden_size),
                                           jnp.float32),
            "b1": 0.01 * jax.random.normal(k[2], (1, prefix_hidden_size),
                                           jnp.float32),
            "w2": 0.05 * jax.random.normal(k[3], (prefix_hidden_size, out_dim),
                                           jnp.float32),
            "b2": 0.01 * jax.random.normal(k[4], (1, out_dim), jnp.float32),
        }
    return {
        "embedding": jax.random.normal(k[0], (pre_seq_len, out_dim),
                                       jnp.float32),
    }


# ------------------------------- reference ---------------------------------- #

def reference_forward(prefix, params, prefix_projection):
    if prefix_projection:
        tok = jnp.take(params["embedding"], prefix, axis=0)
        h = jnp.tanh(tok @ params["w1"] + params["b1"].reshape(-1))
        return h @ params["w2"] + params["b2"].reshape(-1)
    return jnp.take(params["embedding"], prefix, axis=0)


# --------------------------------- main ------------------------------------- #

if __name__ == "__main__":
    # Small shapes consistent with the module's forward.
    B, P = 2, 8                 # batch, prefix length
    pre_seq_len = 8
    hidden_size = 32
    prefix_hidden_size = 64
    num_hidden_layers = 2       # out_dim = 2 * 2 * 32 = 128
    out_dim = num_hidden_layers * 2 * hidden_size

    key = jax.random.PRNGKey(0)
    k_ids, k_par1, k_par2 = jax.random.split(key, 3)
    prefix = jax.random.randint(k_ids, (B, P), 0, pre_seq_len, jnp.int32)

    # --- prefix_projection = True: Embedding -> Linear -> Tanh -> Linear ----
    params_p = init_params(k_par1, pre_seq_len=pre_seq_len,
                           hidden_size=hidden_size,
                           prefix_hidden_size=prefix_hidden_size,
                           num_hidden_layers=num_hidden_layers,
                           prefix_projection=True)
    ref_p = reference_forward(prefix, params_p, True)

    # reference-semantics check with f32 weights
    prep_f32 = prepare_params(params_p, True, weights_dtype=jnp.float32)
    out_f32 = jax.block_until_ready(prefix_encoder_forward(prefix, prep_f32, True))
    assert out_f32.shape == (B, P, out_dim)
    assert jnp.allclose(out_f32, ref_p, atol=1e-3, rtol=1e-3)

    # default fast path: bf16 weights, f32 accumulation (looser tolerance)
    prep_bf16 = prepare_params(params_p, True)
    out_bf16 = jax.block_until_ready(prefix_encoder_forward(prefix, prep_bf16, True))
    assert out_bf16.shape == (B, P, out_dim)
    assert jnp.allclose(out_bf16, ref_p, atol=2e-2, rtol=2e-2)

    # --- prefix_projection = False: plain Embedding --------------------------
    params_e = init_params(k_par2, pre_seq_len=pre_seq_len,
                           hidden_size=hidden_size,
                           prefix_hidden_size=prefix_hidden_size,
                           num_hidden_layers=num_hidden_layers,
                           prefix_projection=False)
    prep_e = prepare_params(params_e, False)
    out_e = jax.block_until_ready(prefix_encoder_forward(prefix, prep_e, False))
    ref_e = reference_forward(prefix, params_e, False)
    assert out_e.shape == (B, P, out_dim)
    assert jnp.allclose(out_e, ref_e, atol=1e-4, rtol=1e-4)

    print("KERNEL_OK")
</pallas_src>

<mosaic_0001>
module attributes {stable_mosaic.version = 11 : i64} {
  func.func @_mlp_gather_kernel(%arg0: i32, %arg1: i32, %arg2: memref<16x1xi32, #tpu.memory_space<vmem>>, %arg3: memref<8x32xf32, #tpu.memory_space<vmem>>, %arg4: memref<32x64xf32, #tpu.memory_space<vmem>>, %arg5: memref<1x64xf32, #tpu.memory_space<vmem>>, %arg6: memref<64x128xf32, #tpu.memory_space<vmem>>, %arg7: memref<1x128xf32, #tpu.memory_space<vmem>>, %arg8: memref<16x128xf32, #tpu.memory_space<vmem>>, %arg9: memref<8x128xf32, #tpu.memory_space<vmem>>) attributes {dimension_semantics = [#tpu.dimension_semantics<parallel>, #tpu.dimension_semantics<arbitrary>], iteration_bounds = array<i64: 1, 1>, scalar_prefetch = 0 : i64, scratch_operands = 1 : i64, tpu.core_type = #tpu.core_type<tc>, window_params = [{transform_indices = @transform_0, window_bounds = array<i64: 16, 1>}, {pipeline_mode = #tpu.pipeline_mode<synchronous>, transform_indices = @transform_1, window_bounds = array<i64: 8, 32>}, {pipeline_mode = #tpu.pipeline_mode<synchronous>, transform_indices = @transform_2, window_bounds = array<i64: 32, 64>}, {pipeline_mode = #tpu.pipeline_mode<synchronous>, transform_indices = @transform_3, window_bounds = array<i64: 1, 64>}, {transform_indices = @transform_4, window_bounds = array<i64: 64, 128>}, {transform_indices = @transform_5, window_bounds = array<i64: 1, 128>}, {transform_indices = @transform_6, window_bounds = array<i64: 16, 128>}]} {
    %c0_i32 = arith.constant 0 : i32
    %0 = arith.cmpi eq, %arg1, %c0_i32 : i32
    %1 = arith.extui %0 : i1 to i32
    %c0_i32_0 = arith.constant 0 : i32
    %2 = arith.cmpi ne, %1, %c0_i32_0 : i32
    scf.if %2 {
      %c0_7 = arith.constant 0 : index
      %c0_8 = arith.constant 0 : index
      %19 = vector.load %arg3[%c0_7, %c0_8] : memref<8x32xf32, #tpu.memory_space<vmem>>, vector<8x32xf32>
      %c0_9 = arith.constant 0 : index
      %c0_10 = arith.constant 0 : index
      %20 = vector.load %arg4[%c0_9, %c0_10] : memref<32x64xf32, #tpu.memory_space<vmem>>, vector<32x64xf32>
      %cst_11 = arith.constant dense<0.000000e+00> : vector<8x64xf32>
      %21 = tpu.matmul %19, %20, %cst_11 {dimension_numbers = #tpu.dot_dimension_numbers<[1], [0], [0], [1], [0, 0, 1, 1], [], []>} : vector<8x32xf32>, vector<32x64xf32>, vector<8x64xf32> -> vector<8x64xf32>
      %c0_12 = arith.constant 0 : index
      %c0_13 = arith.constant 0 : index
      %22 = vector.load %arg5[%c0_12, %c0_13] : memref<1x64xf32, #tpu.memory_space<vmem>>, vector<1x64xf32>
      %23 = vector.broadcast %22 : vector<1x64xf32> to vector<8x64xf32>
      %24 = arith.addf %21, %23 : vector<8x64xf32>
      %25 = math.tanh %24 : vector<8x64xf32>
      %c0_14 = arith.constant 0 : index
      %c0_15 = arith.constant 0 : index
      %26 = vector.load %arg6[%c0_14, %c0_15] : memref<64x128xf32, #tpu.memory_space<vmem>>, vector<64x128xf32>
      %cst_16 = arith.constant dense<0.000000e+00> : vector<8x128xf32>
      %27 = tpu.matmul %25, %26, %cst_16 {dimension_numbers = #tpu.dot_dimension_numbers<[1], [0], [0], [1], [0, 0, 1, 1], [], []>} : vector<8x64xf32>, vector<64x128xf32>, vector<8x128xf32> -> vector<8x128xf32>
      %c0_17 = arith.constant 0 : index
      %c0_18 = arith.constant 0 : index
      %28 = vector.load %arg7[%c0_17, %c0_18] : memref<1x128xf32, #tpu.memory_space<vmem>>, vector<1x128xf32>
      %29 = vector.broadcast %28 : vector<1x128xf32> to vector<8x128xf32>
      %30 = arith.addf %27, %29 : vector<8x128xf32>
      %c0_19 = arith.constant 0 : index
      %c0_20 = arith.constant 0 : index
      %31 = vector.load %arg9[%c0_19, %c0_20] : memref<8x128xf32, #tpu.memory_space<vmem>>, vector<8x128xf32>
      tpu.vector_store %arg9[%c0_19, %c0_20], %30 {strides = array<i32>} : memref<8x128xf32, #tpu.memory_space<vmem>>, vector<8x128xf32>,
    } else {
    }
    %c0 = arith.constant 0 : index
    %c0_1 = arith.constant 0 : index
    %3 = vector.load %arg2[%c0, %c0_1] : memref<16x1xi32, #tpu.memory_space<vmem>>, vector<16x1xi32>
    %c0_2 = arith.constant 0 : index
    %c0_3 = arith.constant 0 : index
    %4 = vector.load %arg9[%c0_2, %c0_3] : memref<8x128xf32, #tpu.memory_space<vmem>>, vector<8x128xf32>
    %5 = tpu.iota {dimensions = array<i32: 1>} : vector<16x8xi32>
    %6 = vector.broadcast %3 : vector<16x1xi32> to vector<16x8xi32>
    %7 = arith.cmpi eq, %5, %6 : vector<16x8xi32>
    %8 = arith.extui %7 : vector<16x8xi1> to vector<16x8xi32>
    %9 = arith.sitofp %8 : vector<16x8xi32> to vector<16x8xf32>
    %10 = arith.truncf %9 : vector<16x8xf32> to vector<16x8xbf16>
    %11 = arith.truncf %4 : vector<8x128xf32> to vector<8x128xbf16>
    %12 = arith.extf %11 : vector<8x128xbf16> to vector<8x128xf32>
    %13 = arith.subf %4, %12 : vector<8x128xf32>
    %14 = arith.truncf %13 : vector<8x128xf32> to vector<8x128xbf16>
    %cst = arith.constant dense<0.000000e+00> : vector<16x128xf32>
    %15 = tpu.matmul %10, %11, %cst {dimension_numbers = #tpu.dot_dimension_numbers<[1], [0], [0], [1], [0, 0, 1, 1], [], []>} : vector<16x8xbf16>, vector<8x128xbf16>, vector<16x128xf32> -> vector<16x128xf32>
    %cst_4 = arith.constant dense<0.000000e+00> : vector<16x128xf32>
    %16 = tpu.matmul %10, %14, %cst_4 {dimension_numbers = #tpu.dot_dimension_numbers<[1], [0], [0], [1], [0, 0, 1, 1], [], []>} : vector<16x8xbf16>, vector<8x128xbf16>, vector<16x128xf32> -> vector<16x128xf32>
    %17 = arith.addf %15, %16 : vector<16x128xf32>
    %c0_5 = arith.constant 0 : index
    %c0_6 = arith.constant 0 : index
    %18 = vector.load %arg8[%c0_5, %c0_6] : memref<16x128xf32, #tpu.memory_space<vmem>>, vector<16x128xf32>
    tpu.vector_store %arg8[%c0_5, %c0_6], %17 {strides = array<i32>} : memref<16x128xf32, #tpu.memory_space<vmem>>, vector<16x128xf32>,
    return
  }
  func.func @transform_0(%arg0: i32, %arg1: i32) -> (i32, i32) {
    %c0_i32 = arith.constant 0 : i32
    %c0_i32_0 = arith.constant 0 : i32
    return %arg1, %c0_i32 : i32, i32
  }
  func.func @transform_1(%arg0: i32, %arg1: i32) -> (i32, i32) {
    %c0_i32 = arith.constant 0 : i32
    %c0_i32_0 = arith.constant 0 : i32
    %c0_i32_1 = arith.constant 0 : i32
    return %c0_i32, %c0_i32_0 : i32, i32
  }
  func.func @transform_2(%arg0: i32, %arg1: i32) -> (i32, i32) {
    %c0_i32 = arith.constant 0 : i32
    %c0_i32_0 = arith.constant 0 : i32
    %c0_i32_1 = arith.constant 0 : i32
    return %c0_i32, %c0_i32_0 : i32, i32
  }
  func.func @transform_3(%arg0: i32, %arg1: i32) -> (i32, i32) {
    %c0_i32 = arith.constant 0 : i32
    %c0_i32_0 = arith.constant 0 : i32
    %c0_i32_1 = arith.constant 0 : i32
    return %c0_i32, %c0_i32_0 : i32, i32
  }
  func.func @transform_4(%arg0: i32, %arg1: i32) -> (i32, i32) {
    %c0_i32 = arith.constant 0 : i32
    %c0_i32_0 = arith.constant 0 : i32
    return %c0_i32, %arg0 : i32, i32
  }
  func.func @transform_5(%arg0: i32, %arg1: i32) -> (i32, i32) {
    %c0_i32 = arith.constant 0 : i32
    %c0_i32_0 = arith.constant 0 : i32
    return %c0_i32, %arg0 : i32, i32
  }
  func.func @transform_6(%arg0: i32, %arg1: i32) -> (i32, i32) {
    %c0_i32 = arith.constant 0 : i32
    return %arg1, %arg0 : i32, i32
  }
}

</mosaic_0001>

<llo_original>
// kernel: tpu_custom_call.1
$region0: #{tpu_custom_call.1}
  #allocation0 [shape = 'u32[]', space=smem, size = 0x4, offset = 0x4, fixed_abs, tag = 'smem constant byte address 0x4 - core index']
  #allocation1 [shape = 'u32[144,128]{1,0:T(1,128)}', space=vmem, size = 0x12000, scoped, tag = 'internal scratch']
  #allocation2 [shape = 'f32[8,128]{1,0:T(8,128)}', space=vmem, size = 0x1000, scoped, tag = 'scratch operand']
  %s0 = inlined_call_operand.vmem [shape: s32[16,1], index: 0, kind: input, shape index: {}]
  %s1 = inlined_call_operand.vmem [shape: f32[8,32], index: 1, kind: input, shape index: {}]
  %s2 = inlined_call_operand.hbm [shape: f32[32,64], index: 2, kind: input, shape index: {}]
  %s3 = inlined_call_operand.vmem [shape: f32[1,64], index: 3, kind: input, shape index: {}]
  %s4 = inlined_call_operand.hbm [shape: f32[64,128], index: 4, kind: input, shape index: {}]
  %s5 = inlined_call_operand.vmem [shape: f32[1,128], index: 5, kind: input, shape index: {}]
  %s6 = inlined_call_operand.hbm [shape: f32[16,128], index: 6, kind: output, shape index: {}]
  %s7 = sld [smem:[#allocation0]]
  $region46: #{tpu_custom_call.1} parent=0
    _
  %s9 = ssub.s32 1, %s7
  %s10 = scalar_select 0, %s9, %s7
  $region1: #{tpu_custom_call.1} parent=0
    #allocation3 [shape = 'u8[16384]{0}', space=vmem, size = 0x4000, scoped, tag = 'input window, operand 2, single buffered']
    #allocation4 [shape = 's32[1]{0}', space=sflag, size = 0x4, scoped, tag = 'scoped memory for tpu_custom_call.1']
    #allocation5 [shape = 's32[1]{0}', space=sflag, size = 0x4, scoped, tag = 'scoped memory for tpu_custom_call.1']
    #allocation6 [shape = 'u8[32768]{0}', space=vmem, size = 0x8000, scoped, tag = 'input window, operand 4, single buffered']
    #allocation7 [shape = 's32[1]{0}', space=sflag, size = 0x4, scoped, tag = 'scoped memory for tpu_custom_call.1']
    #allocation8 [shape = 'u8[8192]{0}', space=vmem, size = 0x2000, scoped, tag = 'output window, operand 0, single buffered']
    %11 = vsyncpa [#allocation4], 0
    %12 = vsyncpa [#allocation7], 0
    %13 = vsyncpa [#allocation5], 0
    // Predicated region
    $region2: #{tpu_custom_call.1} parent=1 // pred_check
      _
    $region3: #{tpu_custom_call.1} parent=1 // pred_check_branch
      %15 = sbr.rel (0) target = $region5
    $region4: #{tpu_custom_call.1} parent=1 // pred_region
      _
    $region5: #{tpu_custom_call.1} parent=1 // pred_fallthru
      _
    // Predicated region
    $region6: #{tpu_custom_call.1} parent=1 // pred_check
      _
    $region7: #{tpu_custom_call.1} parent=1 // pred_check_branch
      %17 = sbr.rel (0) target = $region9
    $region8: #{tpu_custom_call.1} parent=1 // pred_region
      _
    $region9: #{tpu_custom_call.1} parent=1 // pred_fallthru
      _
    // Predicated region
    $region10: #{tpu_custom_call.1} parent=1 // pred_check
      _
    $region11: #{tpu_custom_call.1} parent=1 // pred_check_branch
      %19 = sbr.rel (0) target = $region13
    $region12: #{tpu_custom_call.1} parent=1 // pred_region
      %s21 = ssub.s32 512, 512
      %22 = vsyncadd [#allocation4], %s21
      %s23 = sshll.u32 [#allocation3], 4
      %s24 = int_to_ptr.vmem [resolvable:$true] %s23
      %29 = dma.hbm_to_vmem [thread:$0]  %s2, 512, %s24, [#allocation4], 128, 128, 8
    $region13: #{tpu_custom_call.1} parent=1 // pred_fallthru
      _
    // Predicated region
    $region14: #{tpu_custom_call.1} parent=1 // pred_check
      _
    $region15: #{tpu_custom_call.1} parent=1 // pred_check_branch
      %31 = sbr.rel (0) target = $region17
    $region16: #{tpu_custom_call.1} parent=1 // pred_region
      _
    $region17: #{tpu_custom_call.1} parent=1 // pred_fallthru
      _
    // Predicated region
    $region18: #{tpu_custom_call.1} parent=1 // pred_check
      _
    $region19: #{tpu_custom_call.1} parent=1 // pred_check_branch
      %33 = sbr.rel (0) target = $region21
    $region20: #{tpu_custom_call.1} parent=1 // pred_region
      %s35 = ssub.s32 1024, 1024
      %36 = vsyncadd [#allocation7], %s35
      %s37 = sshll.u32 [#allocation6], 4
      %s38 = int_to_ptr.vmem [resolvable:$true] %s37
      %43 = dma.hbm_to_vmem [thread:$0]  %s4, 1024, %s38, [#allocation7], 128, 128, 8
    $region21: #{tpu_custom_call.1} parent=1 // pred_fallthru
      _
    // Predicated region
    $region22: #{tpu_custom_call.1} parent=1 // pred_check
      _
    $region23: #{tpu_custom_call.1} parent=1 // pred_check_branch
      %45 = sbr.rel (0) target = $region25
    $region24: #{tpu_custom_call.1} parent=1 // pred_region
      _
    $region25: #{tpu_custom_call.1} parent=1 // pred_fallthru
      _
    // Predicated region
    $region26: #{tpu_custom_call.1} parent=1 // pred_check
      _
    $region27: #{tpu_custom_call.1} parent=1 // pred_check_branch
      %47 = sbr.rel (0) target = $region29
    $region28: #{tpu_custom_call.1} parent=1 // pred_region
      %48 = dma.done [#allocation4], 512
    $region29: #{tpu_custom_call.1} parent=1 // pred_fallthru
      _
    // Predicated region
    $region30: #{tpu_custom_call.1} parent=1 // pred_check
      _
    $region31: #{tpu_custom_call.1} parent=1 // pred_check_branch
      %50 = sbr.rel (0) target = $region33
    $region32: #{tpu_custom_call.1} parent=1 // pred_region
      %51 = dma.done [#allocation7], 1024
    $region33: #{tpu_custom_call.1} parent=1 // pred_fallthru
      _
    %p53 = scmp.eq.s32.totalorder 0, 0
    // Predicated region
    $region34: #{tpu_custom_call.1} parent=1 // pred_check
      %p54 = pneg %p53
    $region35: #{tpu_custom_call.1} parent=1 // pred_check_branch
      %56 = sbr.rel (%p54) target = $region37
    $region36: #{tpu_custom_call.1} parent=1 // pred_region
      %v57 = vld [vmem:[%s1] sm:$0xff]
      %v58 = vld [vmem:[#allocation3] sm:$0xff]
      %v59 = vld [vmem:[#allocation3 + $0x8] sm:$0xff]
      %v60 = vld [vmem:[#allocation3 + $0x10] sm:$0xff]
      %v61 = vld [vmem:[#allocation3 + $0x18] sm:$0xff]
      %v62 = vld [vmem:[%s3] sm:$0x1]
      %v64 = vlaneseq
      %v65 = vshrl.u32 %v64, 7
      %v66 = vsub.s32 0, %v65
      %v67 = vrot.slane %v62, %v66
      %vm69 = vcmask 261120
      %v71 = vsel %vm69, %v57, 0
      %73 = vmatprep.subr.mxu0 0.0
      %74 = vmatpush1.msra.mxu0 0.0
      %75 = vmatprep.subr.mxu0 0.0
      %76 = vmatpush1.msra.mxu0 0.0
      %77 = vmatprep.subr.mxu0 0.0
      %78 = vmatpush1.msra.mxu0 0.0
      %79 = vmatprep.subr.mxu0 0.0
      %80 = vmatpush1.msra.mxu0 0.0
      %81 = vmatprep.subr.mxu0 0.0
      %82 = vmatpush1.msra.mxu0 0.0
      %83 = vmatprep.subr.mxu0 0.0
      %84 = vmatpush1.msra.mxu0 0.0
      %85 = vmatprep.subr.mxu0 0.0
      %86 = vmatpush1.msra.mxu0 0.0
      %87 = vmatprep.subr.mxu0 0.0
      %88 = vmatpush1.msra.mxu0 0.0
      %89 = vmatprep.subr.mxu0 0.0
      %90 = vmatpush1.msra.mxu0 0.0
      %91 = vmatprep.subr.mxu0 0.0
      %92 = vmatpush1.msra.mxu0 0.0
      %93 = vmatprep.subr.mxu0 0.0
      %94 = vmatpush1.msra.mxu0 0.0
      %95 = vmatprep.subr.mxu0 0.0
      %96 = vmatpush1.msra.mxu0 0.0
      %97 = vmatprep.subr.mxu0 0.0
      %98 = vmatpush1.msra.mxu0 %v61
      %99 = vmatprep.subr.mxu0 0.0
      %100 = vmatpush1.msra.mxu0 %v60
      %101 = vmatprep.subr.mxu0 0.0
      %102 = vmatpush1.msra.mxu0 %v59
      %103 = vmatprep.subr.mxu0 0.0
      %104 = vmatpush1.msra.mxu0 %v58
      %105 = vmatprep.subr.mxu0 0.0
      %106 = vmatpush2.msra.mxu0 0.0
      %107 = vmatprep.subr.mxu0 0.0
      %108 = vmatpush2.msra.mxu0 0.0
      %109 = vmatprep.subr.mxu0 0.0
      %110 = vmatpush2.msra.mxu0 0.0
      %111 = vmatprep.subr.mxu0 0.0
      %112 = vmatpush2.msra.mxu0 0.0
      %113 = vmatprep.subr.mxu0 0.0
      %114 = vmatpush2.msra.mxu0 0.0
      %115 = vmatprep.subr.mxu0 0.0
      %116 = vmatpush2.msra.mxu0 0.0
      %117 = vmatprep.subr.mxu0 0.0
      %118 = vmatpush2.msra.mxu0 0.0
      %119 = vmatprep.subr.mxu0 0.0
      %120 = vmatpush2.msra.mxu0 0.0
      %121 = vmatprep.subr.mxu0 0.0
      %122 = vmatpush2.msra.mxu0 0.0
      %123 = vmatprep.subr.mxu0 0.0
      %124 = vmatpush2.msra.mxu0 0.0
      %125 = vmatprep.subr.mxu0 0.0
      %126 = vmatpush2.msra.mxu0 0.0
      %127 = vmatprep.subr.mxu0 0.0
      %128 = vmatpush2.msra.mxu0 0.0
      %129 = vmatprep.subr.mxu0 0.0
      %130 = vmatpush2.msra.mxu0 0.0
      %131 = vmatprep.subr.mxu0 0.0
      %132 = vmatpush2.msra.mxu0 0.0
      %133 = vmatprep.subr.mxu0 0.0
      %134 = vmatpush2.msra.mxu0 0.0
      %135 = vmatprep.subr.mxu0 0.0
      %136 = vmatpush2.msra.mxu0 0.0
      %137 = vmatprep.mubr.f32.mxu0 0.0
      %138 = vmatmul.mubr.f32.gmra.mxu0 %v71
      %v139 = vpop.f32.mrf.mxu0
      %v140 = vadd.f32 %v67, %v139
      %v141 = vpop.f32.mrf.mxu0
      %142 = vdwg.mxu0
      %v143 = vtanh.pop %v140
      %v144 = vld [vmem:[#allocation6] sm:$0xff]
      %v145 = vld [vmem:[#allocation6 + $0x8] sm:$0xff]
      %v146 = vld [vmem:[#allocation6 + $0x10] sm:$0xff]
      %v147 = vld [vmem:[#allocation6 + $0x18] sm:$0xff]
      %v148 = vld [vmem:[#allocation6 + $0x20] sm:$0xff]
      %v149 = vld [vmem:[#allocation6 + $0x28] sm:$0xff]
      %v150 = vld [vmem:[#allocation6 + $0x30] sm:$0xff]
      %v151 = vld [vmem:[#allocation6 + $0x38] sm:$0xff]
      %v152 = vld [vmem:[%s5] sm:$0x1]
      %v154 = vlaneseq
      %v155 = vshrl.u32 %v154, 7
      %v156 = vsub.s32 0, %v155
      %v157 = vrot.slane %v152, %v156
      %vm159 = vcmask 523264
      %v161 = vsel %vm159, %v143, 0
      %163 = vmatprep.subr.mxu0 0.0
      %164 = vmatpush1.msra.mxu0 0.0
      %165 = vmatprep.subr.mxu0 0.0
      %166 = vmatpush1.msra.mxu0 0.0
      %167 = vmatprep.subr.mxu0 0.0
      %168 = vmatpush1.msra.mxu0 0.0
      %169 = vmatprep.subr.mxu0 0.0
      %170 = vmatpush1.msra.mxu0 0.0
      %171 = vmatprep.subr.mxu0 0.0
      %172 = vmatpush1.msra.mxu0 0.0
      %173 = vmatprep.subr.mxu0 0.0
      %174 = vmatpush1.msra.mxu0 0.0
      %175 = vmatprep.subr.mxu0 0.0
      %176 = vmatpush1.msra.mxu0 0.0
      %177 = vmatprep.subr.mxu0 0.0
      %178 = vmatpush1.msra.mxu0 0.0
      %179 = vmatprep.subr.mxu0 0.0
      %180 = vmatpush1.msra.mxu0 %v151
      %181 = vmatprep.subr.mxu0 0.0
      %182 = vmatpush1.msra.mxu0 %v150
      %183 = vmatprep.subr.mxu0 0.0
      %184 = vmatpush1.msra.mxu0 %v149
      %185 = vmatprep.subr.mxu0 0.0
      %186 = vmatpush1.msra.mxu0 %v148
      %187 = vmatprep.subr.mxu0 0.0
      %188 = vmatpush1.msra.mxu0 %v147
      %189 = vmatprep.subr.mxu0 0.0
      %190 = vmatpush1.msra.mxu0 %v146
      %191 = vmatprep.subr.mxu0 0.0
      %192 = vmatpush1.msra.mxu0 %v145
      %193 = vmatprep.subr.mxu0 0.0
      %194 = vmatpush1.msra.mxu0 %v144
      %195 = vmatprep.subr.mxu0 0.0
      %196 = vmatpush2.msra.mxu0 0.0
      %197 = vmatprep.subr.mxu0 0.0
      %198 = vmatpush2.msra.mxu0 0.0
      %199 = vmatprep.subr.mxu0 0.0
      %200 = vmatpush2.msra.mxu0 0.0
      %201 = vmatprep.subr.mxu0 0.0
      %202 = vmatpush2.msra.mxu0 0.0
      %203 = vmatprep.subr.mxu0 0.0
      %204 = vmatpush2.msra.mxu0 0.0
      %205 = vmatprep.subr.mxu0 0.0
      %206 = vmatpush2.msra.mxu0 0.0
      %207 = vmatprep.subr.mxu0 0.0
      %208 = vmatpush2.msra.mxu0 0.0
      %209 = vmatprep.subr.mxu0 0.0
      %210 = vmatpush2.msra.mxu0 0.0
      %211 = vmatprep.subr.mxu0 0.0
      %212 = vmatpush2.msra.mxu0 0.0
      %213 = vmatprep.subr.mxu0 0.0
      %214 = vmatpush2.msra.mxu0 0.0
      %215 = vmatprep.subr.mxu0 0.0
      %216 = vmatpush2.msra.mxu0 0.0
      %217 = vmatprep.subr.mxu0 0.0
      %218 = vmatpush2.msra.mxu0 0.0
      %219 = vmatprep.subr.mxu0 0.0
      %220 = vmatpush2.msra.mxu0 0.0
      %221 = vmatprep.subr.mxu0 0.0
      %222 = vmatpush2.msra.mxu0 0.0
      %223 = vmatprep.subr.mxu0 0.0
      %224 = vmatpush2.msra.mxu0 0.0
      %225 = vmatprep.subr.mxu0 0.0
      %226 = vmatpush2.msra.mxu0 0.0
      %227 = vmatprep.mubr.f32.mxu0 0.0
      %228 = vmatmul.mubr.f32.gmra.mxu0 %v161
      %v229 = vpop.f32.mrf.mxu0
      %v230 = vadd.f32 %v157, %v229
      %v231 = vpop.f32.mrf.mxu0
      %232 = vdwg.mxu0
      %233 = vst [vmem:[#allocation2] sm:$0xff] %v230
    $region37: #{tpu_custom_call.1} parent=1 // pred_fallthru
      _
    %v234 = vld [vmem:[%s0] sm:$0xff]
    %v235 = vld [vmem:[%s0 + $0x8] sm:$0xff]
    %v236 = vld [vmem:[#allocation2] sm:$0xff]
    %v237 = vlaneseq
    %v238 = vand.u32 %v237, 127
    %239 = vset.pattern.permute.xlu0 0
    %240 = vperm.xlu0 %239, %v234
    %v241 = vpop.permute.xlu0 %240
    %242 = vset.pattern.permute.xlu0 0
    %243 = vperm.xlu0 %242, %v235
    %v244 = vpop.permute.xlu0 %243
    %vm245 = vcmp.eq.s32.totalorder %v238, %v241
    %vm246 = vcmp.eq.s32.totalorder %v238, %v244
    %v247 = vsel %vm245, 1, 0
    %v248 = vsel %vm246, 1, 0
    %v249 = vcvt.s32.f32 %v247
    %v250 = vcvt.s32.f32 %v248
    %v251 = vpack.c.bf16 %v250, %v249
    %v252 = vpack.c.bf16 %v236, %v236
    %v253 = vunpack.c.l.bf16 %v252
    %v254 = vsub.f32 %v236, %v253
    %v255 = vpack.c.bf16 %v254, %v254
    %vm256 = vcmask 64512
    %v258 = vsel %vm256, %v251, 0
    %vm260 = vcmask 1043456
    %v262 = vsel %vm260, %v255, 0
    %264 = vmatprep.subr.bf16.mxu0 0
    %265 = vmatpush1.bf16.msra.mxu0 0
    %266 = vmatprep.subr.bf16.mxu0 0
    %267 = vmatpush1.bf16.msra.mxu0 0
    %268 = vmatprep.subr.bf16.mxu0 0
    %269 = vmatpush1.bf16.msra.mxu0 0
    %270 = vmatprep.subr.bf16.mxu0 0
    %271 = vmatpush1.bf16.msra.mxu0 0
    %272 = vmatprep.subr.bf16.mxu0 0
    %273 = vmatpush1.bf16.msra.mxu0 0
    %274 = vmatprep.subr.bf16.mxu0 0
    %275 = vmatpush1.bf16.msra.mxu0 0
    %276 = vmatprep.subr.bf16.mxu0 0
    %277 = vmatpush1.bf16.msra.mxu0 0
    %278 = vmatprep.subr.bf16.mxu0 0
    %279 = vmatpush1.bf16.msra.mxu0 %v262
    %280 = vmatprep.subr.bf16.mxu0 0
    %281 = vmatpush2.bf16.msra.mxu0 0
    %282 = vmatprep.subr.bf16.mxu0 0
    %283 = vmatpush2.bf16.msra.mxu0 0
    %284 = vmatprep.subr.bf16.mxu0 0
    %285 = vmatpush2.bf16.msra.mxu0 0
    %286 = vmatprep.subr.bf16.mxu0 0
    %287 = vmatpush2.bf16.msra.mxu0 0
    %288 = vmatprep.subr.bf16.mxu0 0
    %289 = vmatpush2.bf16.msra.mxu0 0
    %290 = vmatprep.subr.bf16.mxu0 0
    %291 = vmatpush2.bf16.msra.mxu0 0
    %292 = vmatprep.subr.bf16.mxu0 0
    %293 = vmatpush2.bf16.msra.mxu0 0
    %294 = vmatprep.subr.bf16.mxu0 0
    %295 = vmatpush2.bf16.msra.mxu0 0
    %296 = vmatprep.mubr.bf16.mxu0 0
    %297 = vmatmul.mubr.bf16.gmra.mxu0 %v258
    %v298 = vpop.f32.mrf.mxu0
    %v299 = vadd.f32 0.0, %v298
    %v300 = vpop.f32.mrf.mxu0
    %v301 = vpop.f32.mrf.mxu0
    %v302 = vadd.f32 0.0, %v301
    %v303 = vpop.f32.mrf.mxu0
    %304 = vdwg.mxu0
    %v306 = vsel %vm260, %v252, 0
    %308 = vmatprep.subr.bf16.mxu0 0
    %309 = vmatpush1.bf16.msra.mxu0 0
    %310 = vmatprep.subr.bf16.mxu0 0
    %311 = vmatpush1.bf16.msra.mxu0 0
    %312 = vmatprep.subr.bf16.mxu0 0
    %313 = vmatpush1.bf16.msra.mxu0 0
    %314 = vmatprep.subr.bf16.mxu0 0
    %315 = vmatpush1.bf16.msra.mxu0 0
    %316 = vmatprep.subr.bf16.mxu0 0
    %317 = vmatpush1.bf16.msra.mxu0 0
    %318 = vmatprep.subr.bf16.mxu0 0
    %319 = vmatpush1.bf16.msra.mxu0 0
    %320 = vmatprep.subr.bf16.mxu0 0
    %321 = vmatpush1.bf16.msra.mxu0 0
    %322 = vmatprep.subr.bf16.mxu0 0
    %323 = vmatpush1.bf16.msra.mxu0 %v306
    %324 = vmatprep.subr.bf16.mxu0 0
    %325 = vmatpush2.bf16.msra.mxu0 0
    %326 = vmatprep.subr.bf16.mxu0 0
    %327 = vmatpush2.bf16.msra.mxu0 0
    %328 = vmatprep.subr.bf16.mxu0 0
    %329 = vmatpush2.bf16.msra.mxu0 0
    %330 = vmatprep.subr.bf16.mxu0 0
    %331 = vmatpush2.bf16.msra.mxu0 0
    %332 = vmatprep.subr.bf16.mxu0 0
    %333 = vmatpush2.bf16.msra.mxu0 0
    %334 = vmatprep.subr.bf16.mxu0 0
    %335 = vmatpush2.bf16.msra.mxu0 0
    %336 = vmatprep.subr.bf16.mxu0 0
    %337 = vmatpush2.bf16.msra.mxu0 0
    %338 = vmatprep.subr.bf16.mxu0 0
    %339 = vmatpush2.bf16.msra.mxu0 0
    %340 = vmatprep.mubr.bf16.mxu0 0
    %341 = vmatmul.mubr.bf16.gmra.mxu0 %v258
    %v342 = vpop.f32.mrf.mxu0
    %v343 = vadd.f32 %v299, %v342
    %v344 = vpop.f32.mrf.mxu0
    %v345 = vpop.f32.mrf.mxu0
    %v346 = vadd.f32 %v302, %v345
    %v347 = vpop.f32.mrf.mxu0
    %348 = vdwg.mxu0
    %349 = vst [vmem:[#allocation8] sm:$0xff] %v343
    %350 = vst [vmem:[#allocation8 + $0x8] sm:$0xff] %v346
    // Predicated region
    $region38: #{tpu_custom_call.1} parent=1 // pred_check
      _
    $region39: #{tpu_custom_call.1} parent=1 // pred_check_branch
      %352 = sbr.rel (0) target = $region41
    $region40: #{tpu_custom_call.1} parent=1 // pred_region
      %s354 = ssub.s32 256, 256
      %355 = vsyncadd [#allocation5], %s354
      %s356 = sshll.u32 [#allocation8], 4
      %s357 = int_to_ptr.vmem [resolvable:$true] %s356
      %362 = dma.vmem_to_hbm [thread:$0]  %s357, 256, %s6, [#allocation5], 128, 128, 8
    $region41: #{tpu_custom_call.1} parent=1 // pred_fallthru
      _
    // Predicated region
    $region42: #{tpu_custom_call.1} parent=1 // pred_check
      _
    $region43: #{tpu_custom_call.1} parent=1 // pred_check_branch
      %364 = sbr.rel (0) target = $region45
    $region44: #{tpu_custom_call.1} parent=1 // pred_region
      %365 = dma.done [#allocation5], 256
    $region45: #{tpu_custom_call.1} parent=1 // pred_fallthru
      _
    %366 = vsyncpa [#allocation4], 1
    %367 = vsyncpa [#allocation7], 1
    %368 = vsyncpa [#allocation5], 1

</llo_original>
